<compile_context>
chip_gen: v7x
topology: tpu7x:2x2x1
jax: 0.10.0
libtpu: 0.0.40
codegen_flags: <defaults>
</compile_context>

<pallas_src>
import jax
import jax.numpy as jnp
from jax.experimental import pallas as pl
from jax.experimental.pallas import tpu as pltpu


def _round_up(x, m):
    return ((x + m - 1) // m) * m


def _scoring_kernel(c_ref, feat_ref, pos_ref, wf_ref, wp_ref, out_ref):
    # c_ref  (SMEM, (1,)): combined bias  weight_feat*b_feat + weight_pos*b_pos
    # wf_ref (VMEM, [1, F]): weight_feat * W_feat   (row vector, grid-resident)
    # wp_ref (VMEM, [1, P]): weight_pos  * W_pos    (row vector, grid-resident)
    # feat_ref: [TILE_N, F], pos_ref: [TILE_N, P], out_ref: [TILE_N, 1]
    c = c_ref[0]
    # VPU multiply + XLU lane-reduce instead of a 1-column MXU matmul.
    feat_score = jnp.sum(feat_ref[...] * wf_ref[...], axis=-1, keepdims=True)
    pos_score = jnp.sum(pos_ref[...] * wp_ref[...], axis=-1, keepdims=True)
    out_ref[...] = (feat_score + pos_score + c).astype(out_ref.dtype)


def scoring_function(feat, pos, w_feat_lin, b_feat_lin, w_pos_lin, b_pos_lin,
                     weight_feat, weight_pos, *, tile_n=None):
    """feat: [N, F] f32, pos: [N, 4] f32.
    w_feat_lin: [1, F], b_feat_lin: [1], w_pos_lin: [1, 4], b_pos_lin: [1],
    weight_feat/weight_pos: [1] (learnable scalars). Returns [N, 1] f32."""
    N, F = feat.shape
    P = pos.shape[1]

    # Fold learnable scalars into weights & bias (tiny wrapper-side arrays — free).
    wf = (weight_feat[0] * w_feat_lin).astype(jnp.float32)      # [1, F]
    wp = (weight_pos[0] * w_pos_lin).astype(jnp.float32)        # [1, P]
    c = (weight_feat[0] * b_feat_lin[0]
         + weight_pos[0] * b_pos_lin[0]).astype(jnp.float32).reshape((1,))

    # Pick TILE_N so double-buffered (feat + pos + out) tiles stay well inside
    # the smallest per-generation VMEM budget (v5e 16 MiB default scoped,
    # v7x 64 MiB physical). Last dims lane-pad to 128 in VMEM.
    if tile_n is None:
        lane = 128
        row_bytes = (max(F, lane) + lane + lane) * 4   # feat + pos(pad) + out(pad)
        budget = 8 * 1024 * 1024
        tile_n = max(8, ((budget // (2 * row_bytes)) // 8) * 8)
        tile_n = min(tile_n, 2048)
    tile_n = min(tile_n, _round_up(N, 8))

    grid = (pl.cdiv(N, tile_n),)

    out = pl.pallas_call(
        _scoring_kernel,
        out_shape=jax.ShapeDtypeStruct((N, 1), jnp.float32),
        grid_spec=pltpu.PrefetchScalarGridSpec(
            num_scalar_prefetch=0,
            grid=grid,
            in_specs=[
                pl.BlockSpec(memory_space=pltpu.SMEM),            # c      (1,)
                pl.BlockSpec((tile_n, F), lambda i: (i, 0)),      # feat tile
                pl.BlockSpec((tile_n, P), lambda i: (i, 0)),      # pos tile
                pl.BlockSpec((1, F), lambda i: (0, 0)),           # wf (resident)
                pl.BlockSpec((1, P), lambda i: (0, 0)),           # wp (resident)
            ],
            out_specs=pl.BlockSpec((tile_n, 1), lambda i: (i, 0)),
        ),
        compiler_params=pltpu.CompilerParams(
            dimension_semantics=("parallel",),
            vmem_limit_bytes=32 * 1024 * 1024,
        ),
        cost_estimate=pl.CostEstimate(
            flops=2 * N * (F + P),
            transcendentals=0,
            bytes_accessed=N * (F + P + 1) * 4,
        ),
    )(c, feat, pos, wf, wp)
    return out


if __name__ == "__main__":
    key = jax.random.PRNGKey(0)
    k_feat, k_pos, k_wf, k_bf, k_wp, k_bp = jax.random.split(key, 6)

    N = 8            # number of graph nodes
    feature_dim = 32
    position_dim = 4

    feat = jax.random.normal(k_feat, (N, feature_dim), dtype=jnp.float32)
    pos = jax.random.normal(k_pos, (N, position_dim), dtype=jnp.float32)

    # Deterministic parameter init (PyTorch Linear-style uniform bounds).
    bound_f = 1.0 / (feature_dim ** 0.5)
    bound_p = 1.0 / (position_dim ** 0.5)
    w_feat_lin = jax.random.uniform(k_wf, (1, feature_dim), jnp.float32,
                                    -bound_f, bound_f)
    b_feat_lin = jax.random.uniform(k_bf, (1,), jnp.float32, -bound_f, bound_f)
    w_pos_lin = jax.random.uniform(k_wp, (1, position_dim), jnp.float32,
                                   -bound_p, bound_p)
    b_pos_lin = jax.random.uniform(k_bp, (1,), jnp.float32, -bound_p, bound_p)
    weight_feat = jnp.array([1.3], dtype=jnp.float32)
    weight_pos = jnp.array([0.7], dtype=jnp.float32)

    out = scoring_function(feat, pos, w_feat_lin, b_feat_lin,
                           w_pos_lin, b_pos_lin, weight_feat, weight_pos)
    out = jax.block_until_ready(out)

    # Pure-JAX reference check.
    ref = (weight_feat * (feat @ w_feat_lin.T + b_feat_lin)
           + weight_pos * (pos @ w_pos_lin.T + b_pos_lin))
    assert out.shape == (N, 1)
    assert jnp.allclose(out, ref, atol=1e-5, rtol=1e-5)

    print("KERNEL_OK")
</pallas_src>

<mosaic_0001>
module attributes {stable_mosaic.version = 11 : i64} {
  func.func @_scoring_kernel(%arg0: i32, %arg1: memref<1xf32, #tpu.memory_space<smem>>, %arg2: memref<8x32xf32, #tpu.memory_space<vmem>>, %arg3: memref<8x4xf32, #tpu.memory_space<vmem>>, %arg4: memref<1x32xf32, #tpu.memory_space<vmem>>, %arg5: memref<1x4xf32, #tpu.memory_space<vmem>>, %arg6: memref<8x1xf32, #tpu.memory_space<vmem>>) attributes {dimension_semantics = [#tpu.dimension_semantics<parallel>], iteration_bounds = array<i64: 1>, scalar_prefetch = 0 : i64, scratch_operands = 0 : i64, tpu.core_type = #tpu.core_type<tc>, window_params = [{transform_indices = @transform_0, window_bounds = array<i64: 1>}, {transform_indices = @transform_1, window_bounds = array<i64: 8, 32>}, {transform_indices = @transform_2, window_bounds = array<i64: 8, 4>}, {pipeline_mode = #tpu.pipeline_mode<synchronous>, transform_indices = @transform_3, window_bounds = array<i64: 1, 32>}, {pipeline_mode = #tpu.pipeline_mode<synchronous>, transform_indices = @transform_4, window_bounds = array<i64: 1, 4>}, {transform_indices = @transform_5, window_bounds = array<i64: 8, 1>}]} {
    %c0 = arith.constant 0 : index
    %0 = memref.load %arg1[%c0] : memref<1xf32, #tpu.memory_space<smem>>
    %c0_0 = arith.constant 0 : index
    %c0_1 = arith.constant 0 : index
    %1 = vector.load %arg2[%c0_0, %c0_1] : memref<8x32xf32, #tpu.memory_space<vmem>>, vector<8x32xf32>
    %c0_2 = arith.constant 0 : index
    %c0_3 = arith.constant 0 : index
    %2 = vector.load %arg4[%c0_2, %c0_3] : memref<1x32xf32, #tpu.memory_space<vmem>>, vector<1x32xf32>
    %3 = vector.broadcast %2 : vector<1x32xf32> to vector<8x32xf32>
    %4 = arith.mulf %1, %3 : vector<8x32xf32>
    %cst = arith.constant dense<0.000000e+00> : vector<8xf32>
    %5 = vector.multi_reduction <add>, %4, %cst [1] : vector<8x32xf32> to vector<8xf32>
    %6 = vector.shape_cast %5 : vector<8xf32> to vector<8x1xf32>
    %c0_4 = arith.constant 0 : index
    %c0_5 = arith.constant 0 : index
    %7 = vector.load %arg3[%c0_4, %c0_5] : memref<8x4xf32, #tpu.memory_space<vmem>>, vector<8x4xf32>
    %c0_6 = arith.constant 0 : index
    %c0_7 = arith.constant 0 : index
    %8 = vector.load %arg5[%c0_6, %c0_7] : memref<1x4xf32, #tpu.memory_space<vmem>>, vector<1x4xf32>
    %9 = vector.broadcast %8 : vector<1x4xf32> to vector<8x4xf32>
    %10 = arith.mulf %7, %9 : vector<8x4xf32>
    %cst_8 = arith.constant dense<0.000000e+00> : vector<8xf32>
    %11 = vector.multi_reduction <add>, %10, %cst_8 [1] : vector<8x4xf32> to vector<8xf32>
    %12 = vector.shape_cast %11 : vector<8xf32> to vector<8x1xf32>
    %13 = arith.addf %6, %12 : vector<8x1xf32>
    %14 = vector.broadcast %0 : f32 to vector<8x1xf32>
    %15 = arith.addf %13, %14 : vector<8x1xf32>
    %c0_9 = arith.constant 0 : index
    %c0_10 = arith.constant 0 : index
    %16 = vector.load %arg6[%c0_9, %c0_10] : memref<8x1xf32, #tpu.memory_space<vmem>>, vector<8x1xf32>
    tpu.vector_store %arg6[%c0_9, %c0_10], %15 {strides = array<i32>} : memref<8x1xf32, #tpu.memory_space<vmem>>, vector<8x1xf32>,
    return
  }
  func.func @transform_0(%arg0: i32) -> i32 {
    %c0_i32 = arith.constant 0 : i32
    %c0_i32_0 = arith.constant 0 : i32
    return %c0_i32 : i32
  }
  func.func @transform_1(%arg0: i32) -> (i32, i32) {
    %c0_i32 = arith.constant 0 : i32
    %c0_i32_0 = arith.constant 0 : i32
    return %arg0, %c0_i32 : i32, i32
  }
  func.func @transform_2(%arg0: i32) -> (i32, i32) {
    %c0_i32 = arith.constant 0 : i32
    %c0_i32_0 = arith.constant 0 : i32
    return %arg0, %c0_i32 : i32, i32
  }
  func.func @transform_3(%arg0: i32) -> (i32, i32) {
    %c0_i32 = arith.constant 0 : i32
    %c0_i32_0 = arith.constant 0 : i32
    %c0_i32_1 = arith.constant 0 : i32
    return %c0_i32, %c0_i32_0 : i32, i32
  }
  func.func @transform_4(%arg0: i32) -> (i32, i32) {
    %c0_i32 = arith.constant 0 : i32
    %c0_i32_0 = arith.constant 0 : i32
    %c0_i32_1 = arith.constant 0 : i32
    return %c0_i32, %c0_i32_0 : i32, i32
  }
  func.func @transform_5(%arg0: i32) -> (i32, i32) {
    %c0_i32 = arith.constant 0 : i32
    %c0_i32_0 = arith.constant 0 : i32
    return %arg0, %c0_i32 : i32, i32
  }
}

</mosaic_0001>

<llo_original>
// kernel: tpu_custom_call.1
$region0: #{tpu_custom_call.1}
  #allocation0 [shape = 'u32[]', space=smem, size = 0x4, offset = 0x4, fixed_abs, tag = 'smem constant byte address 0x4 - core index']
  #allocation1 [shape = 'u32[144,128]{1,0:T(1,128)}', space=vmem, size = 0x12000, scoped, tag = 'internal scratch']
  #allocation2 [shape = 'f32[1]{0:T(128)S(6)}', space=smem, size = 0x200, scoped, tag = 'scoped memory for tpu_custom_call.1']
  %s0 = inlined_call_operand.<no memory space> [shape: f32[1], index: 0, kind: input, shape index: {}]
  %s1 = inlined_call_operand.vmem [shape: f32[8,32], index: 1, kind: input, shape index: {}]
  %s2 = inlined_call_operand.vmem [shape: f32[8,4], index: 2, kind: input, shape index: {}]
  %s3 = inlined_call_operand.vmem [shape: f32[1,32], index: 3, kind: input, shape index: {}]
  %s4 = inlined_call_operand.vmem [shape: f32[1,4], index: 4, kind: input, shape index: {}]
  %s5 = inlined_call_operand.vmem [shape: f32[8,1], index: 5, kind: output, shape index: {}]
  %s6 = sld [smem:[#allocation0]]
  $region30: #{tpu_custom_call.1} parent=0
    _
  %s8 = ssub.s32 1, %s6
  %s9 = scalar_select 0, %s8, %s6
  %10 = sst [smem:[#allocation2]] %s0
  // Predicated region
  $region2: #{tpu_custom_call.1} parent=0 // pred_check
    _
  $region3: #{tpu_custom_call.1} parent=0 // pred_check_branch
    %12 = sbr.rel (0) target = $region5
  $region4: #{tpu_custom_call.1} parent=0 // pred_region
    _
  $region5: #{tpu_custom_call.1} parent=0 // pred_fallthru
    _
  // Predicated region
  $region6: #{tpu_custom_call.1} parent=0 // pred_check
    _
  $region7: #{tpu_custom_call.1} parent=0 // pred_check_branch
    %14 = sbr.rel (0) target = $region9
  $region8: #{tpu_custom_call.1} parent=0 // pred_region
    _
  $region9: #{tpu_custom_call.1} parent=0 // pred_fallthru
    _
  // Predicated region
  $region10: #{tpu_custom_call.1} parent=0 // pred_check
    _
  $region11: #{tpu_custom_call.1} parent=0 // pred_check_branch
    %16 = sbr.rel (0) target = $region13
  $region12: #{tpu_custom_call.1} parent=0 // pred_region
    _
  $region13: #{tpu_custom_call.1} parent=0 // pred_fallthru
    _
  // Predicated region
  $region14: #{tpu_custom_call.1} parent=0 // pred_check
    _
  $region15: #{tpu_custom_call.1} parent=0 // pred_check_branch
    %18 = sbr.rel (0) target = $region17
  $region16: #{tpu_custom_call.1} parent=0 // pred_region
    _
  $region17: #{tpu_custom_call.1} parent=0 // pred_fallthru
    _
  // Predicated region
  $region18: #{tpu_custom_call.1} parent=0 // pred_check
    _
  $region19: #{tpu_custom_call.1} parent=0 // pred_check_branch
    %20 = sbr.rel (0) target = $region21
  $region20: #{tpu_custom_call.1} parent=0 // pred_region
    _
  $region21: #{tpu_custom_call.1} parent=0 // pred_fallthru
    _
  %s21 = sld [smem:[#allocation2]]
  %v22 = vld [vmem:[%s1] sm:$0xff]
  %v23 = vld [vmem:[%s3] sm:$0x1]
  %v25 = vlaneseq
  %v26 = vshrl.u32 %v25, 7
  %v27 = vsub.s32 0, %v26
  %v28 = vrot.slane %v23, %v27
  %v30 = vmul.f32 %v22, %v28
  %vm31 = vcmask 261120
  %v32 = vsel %vm31, %v30, 0.0
  %33 = vadd.xlane.f32.xlu0 %v32
  %v34 = vpop.xlane.xlu0 %33
  %v35 = vld [vmem:[%s2] sm:$0xff]
  %v36 = vld [vmem:[%s4] sm:$0x1]
  %v38 = vlaneseq
  %v39 = vshrl.u32 %v38, 7
  %v40 = vsub.s32 0, %v39
  %v41 = vrot.slane %v36, %v40
  %v43 = vmul.f32 %v35, %v41
  %vm44 = vcmask 31744
  %v45 = vsel %vm44, %v43, 0.0
  %46 = vadd.xlane.f32.xlu0 %v45
  %v47 = vpop.xlane.xlu0 %46
  %v48 = vadd.f32 %v34, %v47
  %v49 = vstv %s21
  %v50 = vadd.f32 %v48, %v49
  %vm51 = vcmask 7168
  %52 = vst.msk [vmem:[%s5] sm:$0xff] %vm51, %v50
  // Predicated region
  $region22: #{tpu_custom_call.1} parent=0 // pred_check
    _
  $region23: #{tpu_custom_call.1} parent=0 // pred_check_branch
    %54 = sbr.rel (0) target = $region25
  $region24: #{tpu_custom_call.1} parent=0 // pred_region
    _
  $region25: #{tpu_custom_call.1} parent=0 // pred_fallthru
    _
  // Predicated region
  $region26: #{tpu_custom_call.1} parent=0 // pred_check
    _
  $region27: #{tpu_custom_call.1} parent=0 // pred_check_branch
    %56 = sbr.rel (0) target = $region29
  $region28: #{tpu_custom_call.1} parent=0 // pred_region
    _
  $region29: #{tpu_custom_call.1} parent=0 // pred_fallthru
    _

</llo_original>
